<compile_context>
chip_gen: v7x
topology: tpu7x:2x2x1
jax: 0.10.0
libtpu: 0.0.40
codegen_flags: <defaults>
</compile_context>

<pallas_src>
import functools

import numpy as np
import jax
import jax.numpy as jnp
from jax.experimental import pallas as pl
from jax.experimental.pallas import tpu as pltpu


def _embedding_kernel(x_ref, o_ref, *, freq_bands, weights, use_recurrence,
                      reseed_every, out_channels):
    """x_ref: (C, TB) VMEM tile; o_ref: (TB, out_channels) VMEM tile.

    freq_bands / weights are static Python tuples (compile-time constants).
    Column ordering matches torch.cat([x, w0*sin(f0 x), w0*cos(f0 x), w1*sin(f1 x), ...], -1).
    """
    x = x_ref[...].astype(jnp.float32)          # (C, TB) — batch on the lane axis.
    tb = x.shape[1]

    parts = [x]                                 # part 0 is x itself.
    s = c = None
    for k, (w, f) in enumerate(zip(weights, freq_bands)):
        if (not use_recurrence) or (k % reseed_every == 0):
            # Exact seed.  f is a static float; f==1.0 skips the multiply, and for
            # logscale f is an exact power of two so f*x introduces no rounding.
            fx = x if f == 1.0 else f * x
            s = jnp.sin(fx)
            c = jnp.cos(fx)
        else:
            # Double-angle recurrence (logscale => f_k = 2 * f_{k-1}); pure VPU work.
            s, c = 2.0 * (s * c), 1.0 - 2.0 * (s * s)
        parts.append(s if w == 1.0 else w * s)  # recurrence state stays unweighted
        parts.append(c if w == 1.0 else w * c)

    # Assemble the (out_channels, TB) slab (sublane-axis concat), pad rows to a
    # multiple of 8 so the transpose sees a natively tiled source.
    pad_rows = (-out_channels) % 8
    if pad_rows:
        parts.append(jnp.zeros((pad_rows, tb), jnp.float32))
    slab = jnp.concatenate(parts, axis=0)       # (out_channels + pad, TB)

    # In-kernel transpose (XLU) -> (TB, out_channels): no separate XLA transpose op,
    # no extra HBM round trip for the dominant tensor.
    yt = slab.T
    o_ref[...] = yt[:, :out_channels].astype(o_ref.dtype)


def embedding_forward(x, *, n_freqs, logscale=True, weights=None, out_dtype=None,
                      reseed_every=4, vmem_budget_bytes=20 * 1024 * 1024):
    """x: (B, C) -> (B, C * (2*n_freqs + 1)), matching PyTorch Embedding.forward."""
    B, C = x.shape
    n_parts = 2 * n_freqs + 1
    out_channels = C * n_parts
    out_dtype = x.dtype if out_dtype is None else jnp.dtype(out_dtype)

    # Deterministic "parameters" (mirrors the PyTorch __init__ / set_weights).
    if logscale:
        freq_bands = tuple(float(2.0 ** k) for k in range(n_freqs))
    else:
        freq_bands = tuple(
            float(v) for v in np.linspace(1.0, 2.0 ** (n_freqs - 1), n_freqs)
        ) if n_freqs > 0 else ()
    if weights is None:
        weights = (1.0,) * n_freqs
    else:
        assert len(weights) == n_freqs
        weights = tuple(float(w) for w in weights)
    use_recurrence = bool(logscale and n_freqs > 1)
    reseed_every = int(max(1, reseed_every))

    in_b = jnp.dtype(x.dtype).itemsize
    out_b = jnp.dtype(out_dtype).itemsize

    # --- Batch-tile selection: VMEM-budgeted, lane-aligned (multiple of 128) --------
    # Account for the padded VMEM layouts of every live buffer per batch column:
    lane_pad_out = ((out_channels + 127) // 128) * 128   # (tb, out_ch) pads lanes to 128
    sub_pad_out = ((out_channels + 7) // 8) * 8          # slab pads rows to 8
    per_col = (2 * 8 * in_b                              # double-buffered (C->8, tb) input
               + 2 * lane_pad_out * out_b                # double-buffered (tb, out_ch) output
               + 4 * (8 * (n_parts + 2)                  # live f32 parts during assembly
                      + sub_pad_out                      # concatenated slab
                      + lane_pad_out))                   # transposed slab
    tb = max(128, (vmem_budget_bytes // max(per_col, 1)) // 128 * 128)
    tb = min(tb, 32768, ((B + 127) // 128) * 128)
    if B >= 1024:
        # Keep at least 2 parallel grid steps so v7x's second TensorCore has work.
        tb = min(tb, ((pl.cdiv(B, 2) + 127) // 128) * 128)
    grid = (pl.cdiv(B, tb),)

    vmem_limit_bytes = int(min(64 * 1024 * 1024, 2 * vmem_budget_bytes + 16 * 1024 * 1024))

    # Cost estimate: ~20 VALU ops per exact sin/cos, ~6 per recurrence pair.
    if use_recurrence:
        n_exact = len([k for k in range(n_freqs) if k % reseed_every == 0])
    else:
        n_exact = n_freqs
    n_rec = n_freqs - n_exact
    cost = pl.CostEstimate(
        flops=int(B * C * (40 * n_exact + 6 * n_rec + 2 * n_parts)),
        transcendentals=int(2 * n_exact * B * C),
        bytes_accessed=int(B * C * in_b + B * out_channels * out_b),
    )

    kernel = functools.partial(
        _embedding_kernel,
        freq_bands=freq_bands,
        weights=weights,
        use_recurrence=use_recurrence,
        reseed_every=reseed_every,
        out_channels=out_channels,
    )

    # Input layout plumbing: batch on the lane axis (x.T is 2N+1 times smaller than the
    # output, so this is the cheap side to transpose; the output is written directly in
    # (B, out_channels) layout by the in-kernel transpose).
    return pl.pallas_call(
        kernel,
        out_shape=jax.ShapeDtypeStruct((B, out_channels), out_dtype),
        grid_spec=pltpu.PrefetchScalarGridSpec(
            num_scalar_prefetch=0,
            grid=grid,
            in_specs=[pl.BlockSpec((C, tb), lambda i: (0, i))],
            out_specs=pl.BlockSpec((tb, out_channels), lambda i: (i, 0)),
        ),
        compiler_params=pltpu.CompilerParams(
            dimension_semantics=("parallel",),
            vmem_limit_bytes=vmem_limit_bytes,
        ),
        cost_estimate=cost,
    )(x.T)


def _reference(x, n_freqs, logscale=True, weights=None):
    if logscale:
        freq_bands = 2.0 ** jnp.arange(n_freqs, dtype=x.dtype)
    else:
        freq_bands = jnp.linspace(1.0, 2.0 ** (n_freqs - 1), n_freqs).astype(x.dtype)
    if weights is None:
        weights = [1.0] * n_freqs
    out = [x]
    for w, f in zip(weights, freq_bands):
        out.append(w * jnp.sin(f * x))
        out.append(w * jnp.cos(f * x))
    return jnp.concatenate(out, axis=-1)


if __name__ == "__main__":
    key = jax.random.PRNGKey(0)

    # 1) Logscale path (double-angle recurrence + periodic exact re-seed), aligned batch.
    B, C, N_FREQS = 256, 3, 4
    x = jax.random.normal(key, (B, C), dtype=jnp.float32)
    out = jax.block_until_ready(embedding_forward(x, n_freqs=N_FREQS, logscale=True))
    ref = _reference(x, N_FREQS, logscale=True)
    assert out.shape == (B, C * (2 * N_FREQS + 1)), out.shape
    assert jnp.allclose(out, ref, atol=2e-5, rtol=1e-5), "logscale mismatch vs reference"

    # 2) Small ragged batch (single 128-wide block, masked writeback) + non-logscale
    #    frequency bands (exact sin/cos per frequency).
    B2 = 40
    x2 = jax.random.normal(jax.random.PRNGKey(1), (B2, C), dtype=jnp.float32)
    out2 = jax.block_until_ready(embedding_forward(x2, n_freqs=N_FREQS, logscale=False))
    ref2 = _reference(x2, N_FREQS, logscale=False)
    assert out2.shape == (B2, C * (2 * N_FREQS + 1)), out2.shape
    assert jnp.allclose(out2, ref2, atol=1e-5, rtol=1e-5), "non-logscale mismatch vs reference"

    # 3) Non-unit static weights (mirrors Embedding.set_weights), logscale recurrence path.
    w = (1.0, 0.5, 0.25, 2.0)
    out3 = jax.block_until_ready(
        embedding_forward(x2, n_freqs=N_FREQS, logscale=True, weights=w))
    ref3 = _reference(x2, N_FREQS, logscale=True, weights=w)
    assert jnp.allclose(out3, ref3, atol=2e-5, rtol=1e-5), "weighted mismatch vs reference"

    print("KERNEL_OK")
</pallas_src>

<mosaic_0001>
module attributes {stable_mosaic.version = 11 : i64} {
  func.func @_embedding_kernel(%arg0: i32, %arg1: memref<3x256xf32, #tpu.memory_space<vmem>>, %arg2: memref<256x27xf32, #tpu.memory_space<vmem>>) attributes {dimension_semantics = [#tpu.dimension_semantics<parallel>], iteration_bounds = array<i64: 1>, scalar_prefetch = 0 : i64, scratch_operands = 0 : i64, tpu.core_type = #tpu.core_type<tc>, window_params = [{transform_indices = @transform_0, window_bounds = array<i64: 3, 256>}, {transform_indices = @transform_1, window_bounds = array<i64: 256, 27>}]} {
    %c0 = arith.constant 0 : index
    %c0_0 = arith.constant 0 : index
    %0 = vector.load %arg1[%c0, %c0_0] : memref<3x256xf32, #tpu.memory_space<vmem>>, vector<3x256xf32>
    %1 = math.sin %0 : vector<3x256xf32>
    %2 = math.cos %0 : vector<3x256xf32>
    %3 = arith.mulf %1, %2 : vector<3x256xf32>
    %cst = arith.constant 2.000000e+00 : f32
    %4 = vector.broadcast %cst : f32 to vector<3x256xf32>
    %5 = arith.mulf %4, %3 : vector<3x256xf32>
    %6 = arith.mulf %1, %1 : vector<3x256xf32>
    %cst_1 = arith.constant 2.000000e+00 : f32
    %7 = vector.broadcast %cst_1 : f32 to vector<3x256xf32>
    %8 = arith.mulf %7, %6 : vector<3x256xf32>
    %cst_2 = arith.constant 1.000000e+00 : f32
    %9 = vector.broadcast %cst_2 : f32 to vector<3x256xf32>
    %10 = arith.subf %9, %8 : vector<3x256xf32>
    %11 = arith.mulf %5, %10 : vector<3x256xf32>
    %cst_3 = arith.constant 2.000000e+00 : f32
    %12 = vector.broadcast %cst_3 : f32 to vector<3x256xf32>
    %13 = arith.mulf %12, %11 : vector<3x256xf32>
    %14 = arith.mulf %5, %5 : vector<3x256xf32>
    %cst_4 = arith.constant 2.000000e+00 : f32
    %15 = vector.broadcast %cst_4 : f32 to vector<3x256xf32>
    %16 = arith.mulf %15, %14 : vector<3x256xf32>
    %cst_5 = arith.constant 1.000000e+00 : f32
    %17 = vector.broadcast %cst_5 : f32 to vector<3x256xf32>
    %18 = arith.subf %17, %16 : vector<3x256xf32>
    %19 = arith.mulf %13, %18 : vector<3x256xf32>
    %cst_6 = arith.constant 2.000000e+00 : f32
    %20 = vector.broadcast %cst_6 : f32 to vector<3x256xf32>
    %21 = arith.mulf %20, %19 : vector<3x256xf32>
    %22 = arith.mulf %13, %13 : vector<3x256xf32>
    %cst_7 = arith.constant 2.000000e+00 : f32
    %23 = vector.broadcast %cst_7 : f32 to vector<3x256xf32>
    %24 = arith.mulf %23, %22 : vector<3x256xf32>
    %cst_8 = arith.constant 1.000000e+00 : f32
    %25 = vector.broadcast %cst_8 : f32 to vector<3x256xf32>
    %26 = arith.subf %25, %24 : vector<3x256xf32>
    %cst_9 = arith.constant 0.000000e+00 : f32
    %27 = vector.broadcast %cst_9 : f32 to vector<5x256xf32>
    %28 = tpu.concatenate %0, %1, %2, %5, %10, %13, %18, %21, %26, %27 in 0 : vector<3x256xf32>, vector<3x256xf32>, vector<3x256xf32>, vector<3x256xf32>, vector<3x256xf32>, vector<3x256xf32>, vector<3x256xf32>, vector<3x256xf32>, vector<3x256xf32>, vector<5x256xf32> -> vector<32x256xf32>
    %29 = tpu.transpose %28, [1, 0] : vector<32x256xf32> -> vector<256x32xf32>
    %30 = vector.extract_strided_slice %29 {offsets = [0, 0], sizes = [256, 27], strides = [1, 1]} : vector<256x32xf32> to vector<256x27xf32>
    %c0_10 = arith.constant 0 : index
    %c0_11 = arith.constant 0 : index
    %31 = vector.load %arg2[%c0_10, %c0_11] : memref<256x27xf32, #tpu.memory_space<vmem>>, vector<256x27xf32>
    tpu.vector_store %arg2[%c0_10, %c0_11], %30 {strides = array<i32>} : memref<256x27xf32, #tpu.memory_space<vmem>>, vector<256x27xf32>,
    return
  }
  func.func @transform_0(%arg0: i32) -> (i32, i32) {
    %c0_i32 = arith.constant 0 : i32
    %c0_i32_0 = arith.constant 0 : i32
    return %c0_i32, %arg0 : i32, i32
  }
  func.func @transform_1(%arg0: i32) -> (i32, i32) {
    %c0_i32 = arith.constant 0 : i32
    %c0_i32_0 = arith.constant 0 : i32
    return %arg0, %c0_i32 : i32, i32
  }
}

</mosaic_0001>

<llo_original>
// kernel: tpu_custom_call.1
$region0: #{tpu_custom_call.1}
  #allocation0 [shape = 'u32[]', space=smem, size = 0x4, offset = 0x4, fixed_abs, tag = 'smem constant byte address 0x4 - core index']
  #allocation1 [shape = 'u32[144,128]{1,0:T(1,128)}', space=vmem, size = 0x12000, scoped, tag = 'internal scratch']
  %s0 = inlined_call_operand.hbm [shape: f32[3,256], index: 0, kind: input, shape index: {}]
  %s1 = inlined_call_operand.vmem [shape: f32[256,27], index: 1, kind: output, shape index: {}]
  %s2 = sld [smem:[#allocation0]]
  $region18: #{tpu_custom_call.1} parent=0
    _
  %s4 = ssub.s32 1, %s2
  %s5 = scalar_select 0, %s4, %s2
  $region1: #{tpu_custom_call.1} parent=0
    #allocation2 [shape = 'u8[4096]{0}', space=vmem, size = 0x1000, scoped, tag = 'input window, operand 0, single buffered']
    #allocation3 [shape = 's32[1]{0}', space=sflag, size = 0x4, scoped, tag = 'scoped memory for tpu_custom_call.1']
    %6 = vsyncpa [#allocation3], 0
    // Predicated region
    $region2: #{tpu_custom_call.1} parent=1 // pred_check
      _
    $region3: #{tpu_custom_call.1} parent=1 // pred_check_branch
      %8 = sbr.rel (0) target = $region5
    $region4: #{tpu_custom_call.1} parent=1 // pred_region
      %s10 = ssub.s32 128, 128
      %11 = vsyncadd [#allocation3], %s10
      %s13 = sshll.u32 [#allocation2], 4
      %s14 = int_to_ptr.vmem [resolvable:$true] %s13
      %16 = dma.hbm_to_vmem [thread:$0]  %s0, 128, %s14, [#allocation3]
    $region5: #{tpu_custom_call.1} parent=1 // pred_fallthru
      _
    // Predicated region
    $region6: #{tpu_custom_call.1} parent=1 // pred_check
      _
    $region7: #{tpu_custom_call.1} parent=1 // pred_check_branch
      %18 = sbr.rel (0) target = $region9
    $region8: #{tpu_custom_call.1} parent=1 // pred_region
      %19 = dma.done [#allocation3], 128
    $region9: #{tpu_custom_call.1} parent=1 // pred_fallthru
      _
    %v20 = vld [vmem:[#allocation2] sm:$0x77]
    %v21 = vand.u32 2147483647, %v20
    %vm22 = vcmp.le.f32.partialorder %v21, 0.7853982
    %vm23 = vcmp.lt.s32.totalorder %v20, 0
    %v24 = vand.u32 %v20, 2139095040
    %v25 = vshrl.u32 %v24, 23
    %v26 = vsub.s32 %v25, 127
    %v27 = vand.u32 2147483647, %v20
    %v28 = vand.u32 %v27, 8388607
    %v29 = vor.u32 %v28, 8388608
    %v30 = vsub.s32 0, %v29
    %v31 = vadd.s32 %v26, 1
    %vm32 = vcmp.gt.s32.totalorder %v31, 0
    %v33 = vsel %vm32, %v31, 0
    %v34 = vshrl.u32 %v33, 5
    %v35 = vand.u32 %v33, 31
    %v36 = vsub.s32 32, %v35
    %v37 = vshrl.u32 683565275, %v36
    %v38 = vshll.u32 683565275, %v35
    %v39 = vshrl.u32 2475754826, %v36
    %v40 = vor.u32 %v38, %v39
    %v41 = vshll.u32 2475754826, %v35
    %v42 = vshrl.u32 2131351028, %v36
    %v43 = vor.u32 %v41, %v42
    %v44 = vshll.u32 2131351028, %v35
    %v45 = vshrl.u32 2102212464, %v36
    %v46 = vor.u32 %v44, %v45
    %v47 = vshll.u32 2102212464, %v35
    %v48 = vshrl.u32 920167782, %v36
    %v49 = vor.u32 %v47, %v48
    %v50 = vshll.u32 920167782, %v35
    %v51 = vshrl.u32 1326507024, %v36
    %v52 = vor.u32 %v50, %v51
    %vm53 = vcmp.lt.s32.totalorder %v34, 1
    %vm54 = vcmp.lt.s32.totalorder %v34, 2
    %vm55 = vcmp.lt.s32.totalorder %v34, 3
    %vm56 = vcmp.lt.s32.totalorder %v34, 4
    %v57 = vsel %vm53, %v37, %v40
    %v58 = vsel %vm56, %v46, 2102212464
    %v59 = vsel %vm55, %v43, %v58
    %v60 = vsel %vm54, %v57, %v59
    %v61 = vsel %vm53, %v40, %v43
    %v62 = vsel %vm56, %v49, 920167782
    %v63 = vsel %vm55, %v46, %v62
    %v64 = vsel %vm54, %v61, %v63
    %v65 = vsel %vm53, %v43, %v46
    %v66 = vsel %vm56, %v52, 1326507024
    %v67 = vsel %vm55, %v49, %v66
    %v68 = vsel %vm54, %v65, %v67
    %v69 = vshll.u32 %v29, 8
    %v70 = vmul.u32.u64.compose %v69, %v68
    %v71 = vextract.low.u32 %v70
    %v72 = vextract.high.u32 %v70
    %v73 = vmul.u32.u64.compose %v69, %v64
    %v74 = vextract.low.u32 %v73
    %v75 = vextract.high.u32 %v73
    %v76 = vmul.u32 %v69, %v60
    %v77 = vadd.s32 %v72, %v74
    %vm78 = vc.u32 %v72, %v74
    %v79 = vadd.s32 %v75, 1
    %v80 = vsel %vm78, %v79, %v75
    %v81 = vadd.s32 %v76, %v80
    %v82 = vadd.s32 %v81, 536870912
    %v83 = vshrl.u32 %v82, 30
    %v84 = vshll.u32 %v83, 30
    %v85 = vsub.s32 %v81, %v84
    %vm86 = vcmp.lt.s32.totalorder %v85, 0
    %v87 = vsub.s32 0, %v85
    %v88 = vsel %vm86, %v87, %v85
    %v89 = vclz %v88
    %v90 = vsub.s32 %v89, 2
    %vm91 = vcmp.gt.s32.totalorder 0, %v90
    %v92 = vsel %vm91, 0, %v90
    %v93 = vsub.s32 32, %v92
    %v94 = vshll.u32 %v85, %v92
    %v95 = vshrl.u32 %v77, %v93
    %v96 = vor.u32 %v94, %v95
    %v97 = vsub.s32 4294967266, %v92
    %v98 = vadd.s32 %v97, 127
    %v99 = vshll.u32 %v98, 23
    %v100 = vor.u32 4788187, %v99
    %v101 = vand.u32 2147483647, %v100
    %v103 = vcvt.s32.f32 %v96
    %v104 = vmul.f32 %v103, %v101
    %v105 = vxor.u32 %v104, 2147483648
    %v106 = vsel %vm23, %v105, %v104
    %v107 = vsub.s32 4, %v83
    %v108 = vsel %vm23, %v107, %v83
    %v109 = vsel %vm22, %v20, %v106
    %v110 = vsel %vm22, 0, %v108
    %v111 = vcosq.f32.pop %v109
    %v112 = vsinq.f32.pop %v109
    %vm113 = vweird.f32 %v20
    %v114 = vadd.s32 %v110, 3
    %v115 = vand.u32 %v114, 3
    %vm116 = vcmp.lt.s32.totalorder %v115, 2
    %vm117 = vcmp.eq.s32.totalorder %v115, 0
    %v118 = vxor.u32 %v112, 2147483648
    %v119 = vsel %vm117, %v111, %v118
    %vm120 = vcmp.eq.s32.totalorder %v115, 2
    %v121 = vxor.u32 %v111, 2147483648
    %v122 = vsel %vm120, %v121, %v112
    %v123 = vsel %vm116, %v119, %v122
    %v124 = vsel %vm113, nan, %v123
    %v125 = vand.u32 2147483647, %v20
    %vm126 = vcmp.le.f32.partialorder %v125, 0.7853982
    %vm127 = vcmp.lt.s32.totalorder %v20, 0
    %v128 = vand.u32 %v20, 2139095040
    %v129 = vshrl.u32 %v128, 23
    %v130 = vsub.s32 %v129, 127
    %v131 = vand.u32 2147483647, %v20
    %v132 = vand.u32 %v131, 8388607
    %v133 = vor.u32 %v132, 8388608
    %v134 = vsub.s32 0, %v133
    %v135 = vadd.s32 %v130, 1
    %vm136 = vcmp.gt.s32.totalorder %v135, 0
    %v137 = vsel %vm136, %v135, 0
    %v138 = vshrl.u32 %v137, 5
    %v139 = vand.u32 %v137, 31
    %v140 = vsub.s32 32, %v139
    %v141 = vshrl.u32 683565275, %v140
    %v142 = vshll.u32 683565275, %v139
    %v143 = vshrl.u32 2475754826, %v140
    %v144 = vor.u32 %v142, %v143
    %v145 = vshll.u32 2475754826, %v139
    %v146 = vshrl.u32 2131351028, %v140
    %v147 = vor.u32 %v145, %v146
    %v148 = vshll.u32 2131351028, %v139
    %v149 = vshrl.u32 2102212464, %v140
    %v150 = vor.u32 %v148, %v149
    %v151 = vshll.u32 2102212464, %v139
    %v152 = vshrl.u32 920167782, %v140
    %v153 = vor.u32 %v151, %v152
    %v154 = vshll.u32 920167782, %v139
    %v155 = vshrl.u32 1326507024, %v140
    %v156 = vor.u32 %v154, %v155
    %vm157 = vcmp.lt.s32.totalorder %v138, 1
    %vm158 = vcmp.lt.s32.totalorder %v138, 2
    %vm159 = vcmp.lt.s32.totalorder %v138, 3
    %vm160 = vcmp.lt.s32.totalorder %v138, 4
    %v161 = vsel %vm157, %v141, %v144
    %v162 = vsel %vm160, %v150, 2102212464
    %v163 = vsel %vm159, %v147, %v162
    %v164 = vsel %vm158, %v161, %v163
    %v165 = vsel %vm157, %v144, %v147
    %v166 = vsel %vm160, %v153, 920167782
    %v167 = vsel %vm159, %v150, %v166
    %v168 = vsel %vm158, %v165, %v167
    %v169 = vsel %vm157, %v147, %v150
    %v170 = vsel %vm160, %v156, 1326507024
    %v171 = vsel %vm159, %v153, %v170
    %v172 = vsel %vm158, %v169, %v171
    %v173 = vshll.u32 %v133, 8
    %v174 = vmul.u32.u64.compose %v173, %v172
    %v175 = vextract.low.u32 %v174
    %v176 = vextract.high.u32 %v174
    %v177 = vmul.u32.u64.compose %v173, %v168
    %v178 = vextract.low.u32 %v177
    %v179 = vextract.high.u32 %v177
    %v180 = vmul.u32 %v173, %v164
    %v181 = vadd.s32 %v176, %v178
    %vm182 = vc.u32 %v176, %v178
    %v183 = vadd.s32 %v179, 1
    %v184 = vsel %vm182, %v183, %v179
    %v185 = vadd.s32 %v180, %v184
    %v186 = vadd.s32 %v185, 536870912
    %v187 = vshrl.u32 %v186, 30
    %v188 = vshll.u32 %v187, 30
    %v189 = vsub.s32 %v185, %v188
    %vm190 = vcmp.lt.s32.totalorder %v189, 0
    %v191 = vsub.s32 0, %v189
    %v192 = vsel %vm190, %v191, %v189
    %v193 = vclz %v192
    %v194 = vsub.s32 %v193, 2
    %vm195 = vcmp.gt.s32.totalorder 0, %v194
    %v196 = vsel %vm195, 0, %v194
    %v197 = vsub.s32 32, %v196
    %v198 = vshll.u32 %v189, %v196
    %v199 = vshrl.u32 %v181, %v197
    %v200 = vor.u32 %v198, %v199
    %v201 = vsub.s32 4294967266, %v196
    %v202 = vadd.s32 %v201, 127
    %v203 = vshll.u32 %v202, 23
    %v204 = vor.u32 4788187, %v203
    %v205 = vand.u32 2147483647, %v204
    %v207 = vcvt.s32.f32 %v200
    %v208 = vmul.f32 %v207, %v205
    %v209 = vxor.u32 %v208, 2147483648
    %v210 = vsel %vm127, %v209, %v208
    %v211 = vsub.s32 4, %v187
    %v212 = vsel %vm127, %v211, %v187
    %v213 = vsel %vm126, %v20, %v210
    %v214 = vsel %vm126, 0, %v212
    %v215 = vcosq.f32.pop %v213
    %v216 = vsinq.f32.pop %v213
    %vm217 = vweird.f32 %v20
    %v218 = vand.u32 %v214, 3
    %vm219 = vcmp.lt.s32.totalorder %v218, 2
    %vm220 = vcmp.eq.s32.totalorder %v218, 0
    %v221 = vxor.u32 %v216, 2147483648
    %v222 = vsel %vm220, %v215, %v221
    %vm223 = vcmp.eq.s32.totalorder %v218, 2
    %v224 = vxor.u32 %v215, 2147483648
    %v225 = vsel %vm223, %v224, %v216
    %v226 = vsel %vm219, %v222, %v225
    %v227 = vsel %vm217, nan, %v226
    %v228 = vmul.f32 %v124, %v227
    %v229 = vmul.f32 %v228, 2.0
    %v230 = vmul.f32 %v124, %v124
    %v231 = vmul.f32 %v230, 2.0
    %v232 = vsub.f32 1.0, %v231
    %v233 = vmul.f32 %v229, %v232
    %v234 = vmul.f32 %v233, 2.0
    %v235 = vmul.f32 %v229, %v229
    %v236 = vmul.f32 %v235, 2.0
    %v237 = vsub.f32 1.0, %v236
    %v238 = vmul.f32 %v234, %v237
    %v239 = vmul.f32 %v238, 2.0
    %v240 = vmul.f32 %v234, %v234
    %v241 = vmul.f32 %v240, 2.0
    %v242 = vsub.f32 1.0, %v241
    %v244 = vcombine.high %v20, %v20
    %v247 = vcombine.high %v124, %v124
    %v248 = vrot.slane %v124, 5
    %v249 = vrot.slane %v247, 5
    %v253 = vcombine.high %v227, %v227
    %v254 = vrot.slane %v227, 2
    %v255 = vrot.slane %v253, 2
    %v259 = vcombine.high %v229, %v229
    %v260 = vrot.slane %v229, 7
    %v261 = vrot.slane %v259, 7
    %v265 = vcombine.low %v232, %v232
    %v268 = vcombine.high %v234, %v234
    %v269 = vrot.slane %v234, 1
    %v270 = vrot.slane %v268, 1
    %v274 = vcombine.high %v237, %v237
    %v275 = vrot.slane %v237, 6
    %v276 = vrot.slane %v274, 6
    %v280 = vcombine.high %v239, %v239
    %v281 = vrot.slane %v239, 3
    %v282 = vrot.slane %v280, 3
    %v286 = vcombine.high %v242, %v242
    %vm288 = vcmask 1042432
    %v289 = vsel %vm288, %v20, %v248
    %v290 = vsel %vm288, %v244, %v249
    %vm291 = vcmask 1045504
    %v292 = vsel %vm291, %v289, %v254
    %v293 = vsel %vm291, %v290, %v255
    %vm294 = vcmask 1040384
    %v295 = vsel %vm294, %v254, %v260
    %v296 = vsel %vm294, %v255, %v261
    %vm297 = vcmask 1043456
    %v298 = vsel %vm297, %v295, %v265
    %v299 = vsel %vm297, %v296, %v232
    %vm300 = vcmask 1046528
    %v301 = vsel %vm300, %v298, %v269
    %v302 = vsel %vm300, %v299, %v270
    %vm303 = vcmask 1041408
    %v304 = vsel %vm303, %v269, %v275
    %v305 = vsel %vm303, %v270, %v276
    %vm306 = vcmask 1044480
    %v307 = vsel %vm306, %v304, %v281
    %v308 = vsel %vm306, %v305, %v282
    %v309 = vsel %vm288, %v242, 0.0
    %v310 = vsel %vm288, %v286, 0.0
    %311 = vxpose.xlu0.b32.start [1/16] %v292, 128
    %312 = vxpose.xlu0.b32.cont [2/16] %v301, 128
    %313 = vxpose.xlu0.b32.cont [3/16] %v307, 128
    %314 = vxpose.xlu0.b32.cont [4/16] %v309, 128
    %315 = vxpose.xlu0.b32.cont [5/16] 0.0, 128
    %316 = vxpose.xlu0.b32.cont [6/16] 0.0, 128
    %317 = vxpose.xlu0.b32.cont [7/16] 0.0, 128
    %318 = vxpose.xlu0.b32.cont [8/16] 0.0, 128
    %319 = vxpose.xlu0.b32.cont [9/16] 0.0, 128
    %320 = vxpose.xlu0.b32.cont [10/16] 0.0, 128
    %321 = vxpose.xlu0.b32.cont [11/16] 0.0, 128
    %322 = vxpose.xlu0.b32.cont [12/16] 0.0, 128
    %323 = vxpose.xlu0.b32.cont [13/16] 0.0, 128
    %324 = vxpose.xlu0.b32.cont [14/16] 0.0, 128
    %325 = vxpose.xlu0.b32.cont [15/16] 0.0, 128
    %326 = vxpose.xlu0.b32.end [16/16] 0.0, 128
    %v327 = vpop.trf.xlu0
    %v328 = vpop.trf.xlu0
    %v329 = vpop.trf.xlu0
    %v330 = vpop.trf.xlu0
    %v331 = vpop.trf.xlu0
    %v332 = vpop.trf.xlu0
    %v333 = vpop.trf.xlu0
    %v334 = vpop.trf.xlu0
    %v335 = vpop.trf.xlu0
    %v336 = vpop.trf.xlu0
    %v337 = vpop.trf.xlu0
    %v338 = vpop.trf.xlu0
    %v339 = vpop.trf.xlu0
    %v340 = vpop.trf.xlu0
    %v341 = vpop.trf.xlu0
    %v342 = vpop.trf.xlu0
    %343 = vxpose.xlu0.b32.start [1/16] %v293, 128
    %344 = vxpose.xlu0.b32.cont [2/16] %v302, 128
    %345 = vxpose.xlu0.b32.cont [3/16] %v308, 128
    %346 = vxpose.xlu0.b32.cont [4/16] %v310, 128
    %347 = vxpose.xlu0.b32.cont [5/16] 0.0, 128
    %348 = vxpose.xlu0.b32.cont [6/16] 0.0, 128
    %349 = vxpose.xlu0.b32.cont [7/16] 0.0, 128
    %350 = vxpose.xlu0.b32.cont [8/16] 0.0, 128
    %351 = vxpose.xlu0.b32.cont [9/16] 0.0, 128
    %352 = vxpose.xlu0.b32.cont [10/16] 0.0, 128
    %353 = vxpose.xlu0.b32.cont [11/16] 0.0, 128
    %354 = vxpose.xlu0.b32.cont [12/16] 0.0, 128
    %355 = vxpose.xlu0.b32.cont [13/16] 0.0, 128
    %356 = vxpose.xlu0.b32.cont [14/16] 0.0, 128
    %357 = vxpose.xlu0.b32.cont [15/16] 0.0, 128
    %358 = vxpose.xlu0.b32.end [16/16] 0.0, 128
    %v359 = vpop.trf.xlu0
    %v360 = vpop.trf.xlu0
    %v361 = vpop.trf.xlu0
    %v362 = vpop.trf.xlu0
    %v363 = vpop.trf.xlu0
    %v364 = vpop.trf.xlu0
    %v365 = vpop.trf.xlu0
    %v366 = vpop.trf.xlu0
    %v367 = vpop.trf.xlu0
    %v368 = vpop.trf.xlu0
    %v369 = vpop.trf.xlu0
    %v370 = vpop.trf.xlu0
    %v371 = vpop.trf.xlu0
    %v372 = vpop.trf.xlu0
    %v373 = vpop.trf.xlu0
    %v374 = vpop.trf.xlu0
    %vm375 = vcmask 220160
    %376 = vst.msk [vmem:[%s1] sm:$0xff] %vm375, %v327
    %377 = vst.msk [vmem:[%s1 + $0x8] sm:$0xff] %vm375, %v328
    %378 = vst.msk [vmem:[%s1 + $0x10] sm:$0xff] %vm375, %v329
    %379 = vst.msk [vmem:[%s1 + $0x18] sm:$0xff] %vm375, %v330
    %380 = vst.msk [vmem:[%s1 + $0x20] sm:$0xff] %vm375, %v331
    %381 = vst.msk [vmem:[%s1 + $0x28] sm:$0xff] %vm375, %v332
    %382 = vst.msk [vmem:[%s1 + $0x30] sm:$0xff] %vm375, %v333
    %383 = vst.msk [vmem:[%s1 + $0x38] sm:$0xff] %vm375, %v334
    %384 = vst.msk [vmem:[%s1 + $0x40] sm:$0xff] %vm375, %v335
    %385 = vst.msk [vmem:[%s1 + $0x48] sm:$0xff] %vm375, %v336
    %386 = vst.msk [vmem:[%s1 + $0x50] sm:$0xff] %vm375, %v337
    %387 = vst.msk [vmem:[%s1 + $0x58] sm:$0xff] %vm375, %v338
    %388 = vst.msk [vmem:[%s1 + $0x60] sm:$0xff] %vm375, %v339
    %389 = vst.msk [vmem:[%s1 + $0x68] sm:$0xff] %vm375, %v340
    %390 = vst.msk [vmem:[%s1 + $0x70] sm:$0xff] %vm375, %v341
    %391 = vst.msk [vmem:[%s1 + $0x78] sm:$0xff] %vm375, %v342
    %392 = vst.msk [vmem:[%s1 + $0x80] sm:$0xff] %vm375, %v359
    %393 = vst.msk [vmem:[%s1 + $0x88] sm:$0xff] %vm375, %v360
    %394 = vst.msk [vmem:[%s1 + $0x90] sm:$0xff] %vm375, %v361
    %395 = vst.msk [vmem:[%s1 + $0x98] sm:$0xff] %vm375, %v362
    %396 = vst.msk [vmem:[%s1 + $0xa0] sm:$0xff] %vm375, %v363
    %397 = vst.msk [vmem:[%s1 + $0xa8] sm:$0xff] %vm375, %v364
    %398 = vst.msk [vmem:[%s1 + $0xb0] sm:$0xff] %vm375, %v365
    %399 = vst.msk [vmem:[%s1 + $0xb8] sm:$0xff] %vm375, %v366
    %400 = vst.msk [vmem:[%s1 + $0xc0] sm:$0xff] %vm375, %v367
    %401 = vst.msk [vmem:[%s1 + $0xc8] sm:$0xff] %vm375, %v368
    %402 = vst.msk [vmem:[%s1 + $0xd0] sm:$0xff] %vm375, %v369
    %403 = vst.msk [vmem:[%s1 + $0xd8] sm:$0xff] %vm375, %v370
    %404 = vst.msk [vmem:[%s1 + $0xe0] sm:$0xff] %vm375, %v371
    %405 = vst.msk [vmem:[%s1 + $0xe8] sm:$0xff] %vm375, %v372
    %406 = vst.msk [vmem:[%s1 + $0xf0] sm:$0xff] %vm375, %v373
    %407 = vst.msk [vmem:[%s1 + $0xf8] sm:$0xff] %vm375, %v374
    // Predicated region
    $region10: #{tpu_custom_call.1} parent=1 // pred_check
      _
    $region11: #{tpu_custom_call.1} parent=1 // pred_check_branch
      %409 = sbr.rel (0) target = $region13
    $region12: #{tpu_custom_call.1} parent=1 // pred_region
      _
    $region13: #{tpu_custom_call.1} parent=1 // pred_fallthru
      _
    // Predicated region
    $region14: #{tpu_custom_call.1} parent=1 // pred_check
      _
    $region15: #{tpu_custom_call.1} parent=1 // pred_check_branch
      %411 = sbr.rel (0) target = $region17
    $region16: #{tpu_custom_call.1} parent=1 // pred_region
      _
    $region17: #{tpu_custom_call.1} parent=1 // pred_fallthru
      _
    %412 = vsyncpa [#allocation3], 1

</llo_original>
